<compile_context>
chip_gen: v7x
topology: tpu7x:2x2x1
jax: 0.10.0
libtpu: 0.0.40
codegen_flags: <defaults>
</compile_context>

<pallas_src>
import jax
import jax.numpy as jnp
from jax.experimental import pallas as pl
from jax.experimental.pallas import tpu as pltpu


def spatial_softmax_kernel(x_ref, wp_ref, bp_ref, pos_ref, wxt_ref, wyt_ref,
                           bo_ref, o_ref, kx_ref, ky_ref):
    # x_ref:   (bb, C, HW)  images handled by this grid step
    # wp_ref:  (K, C)       1x1-conv weight, pre-scaled by 1/temperature
    # bp_ref:  (K, 1)       1x1-conv bias,   pre-scaled by 1/temperature
    # pos_ref: (3, HW)      rows = [ones, pos_x, pos_y]
    # wxt_ref: (K, F)       x-coordinate columns of Linear(2K->F) weight, transposed
    # wyt_ref: (K, F)       y-coordinate columns of Linear(2K->F) weight, transposed
    # bo_ref:  (1, F)       Linear bias (row form)
    # o_ref:   (bb, F)      lane-dense output block
    # kx_ref, ky_ref: (bb, K) VMEM scratch holding expected keypoint coordinates
    bb = x_ref.shape[0]
    wp = wp_ref[...]
    bp = bp_ref[...]
    pos = pos_ref[...]

    def body(i, carry):
        xi = x_ref[i]                                                  # (C, HW)
        # 1x1 conv == channel matmul on the MXU (temperature already folded in)
        logits = jnp.dot(wp, xi, preferred_element_type=jnp.float32) + bp
        # numerically-stable, UN-normalized softmax numerator
        m = jnp.max(logits, axis=-1, keepdims=True)                    # (K, 1)
        e = jnp.exp(logits - m)                                        # (K, HW)
        # fused reductions on the MXU: rows of `mom` = [sum(e), sum(e*px), sum(e*py)];
        # contracting over HW puts the keypoint index on the lane axis -> (3, K)
        mom = jax.lax.dot_general(pos, e, (((1,), (1,)), ((), ())),
                                  preferred_element_type=jnp.float32)
        inv = 1.0 / mom[0:1, :]                                        # (1, K) exact
        kx_ref[pl.ds(i, 1), :] = mom[1:2, :] * inv                     # E[x] per kp
        ky_ref[pl.ds(i, 1), :] = mom[2:3, :] * inv                     # E[y] per kp
        return carry

    jax.lax.fori_loop(0, bb, body, 0, unroll=True)

    # Linear(2K -> F): interleaved [x0,y0,x1,y1,...] keypoints handled by the
    # pre-split / pre-transposed weight halves; one lane-dense (bb, F) store.
    out = (jnp.dot(kx_ref[...], wxt_ref[...], preferred_element_type=jnp.float32)
           + jnp.dot(ky_ref[...], wyt_ref[...], preferred_element_type=jnp.float32)
           + bo_ref[...])
    o_ref[...] = out


def spatial_softmax(x, wp, bp, wout, bout, temperature, *, block_b=8):
    """x: (B, C, H, W) float32. Returns (B, F) float32 (eval mode, no noise)."""
    B, C, H, W = x.shape
    HW = H * W
    K = wp.shape[0]
    F = wout.shape[0]

    # images per grid step: amortize per-step pipeline overhead, but keep >=2
    # grid steps when possible so both TensorCores on v7x get work.
    bb = max(1, min(block_b, B // 2))
    nb = -(-B // bb)                       # cdiv
    b_pad = nb * bb

    x2 = x.reshape(B, C, HW).astype(jnp.float32)
    if b_pad != B:
        x2 = jnp.pad(x2, ((0, b_pad - B), (0, 0), (0, 0)))

    # fold 1/temperature into the projection (softmax invariant to rescaling)
    inv_t = jnp.float32(1.0) / jnp.asarray(temperature, dtype=jnp.float32)
    wp_s = wp.astype(jnp.float32) * inv_t                    # (K, C)
    bp_s = bp.astype(jnp.float32).reshape(K, 1) * inv_t      # (K, 1)

    # augmented pixel-location matrix [ones; pos_x; pos_y] (np.meshgrid 'xy')
    xs = jnp.linspace(-1.0, 1.0, W, dtype=jnp.float32)
    ys = jnp.linspace(-1.0, 1.0, H, dtype=jnp.float32)
    px, py = jnp.meshgrid(xs, ys)                            # each (H, W)
    pos_aug = jnp.stack([jnp.ones((HW,), jnp.float32),
                         px.reshape(HW), py.reshape(HW)], axis=0)     # (3, HW)

    # keypoints flatten as [x0, y0, x1, y1, ...]: split the Linear weight into
    # x-/y-columns and pre-transpose for row-form (bb, K) @ (K, F) matmuls.
    wxt = wout[:, 0::2].astype(jnp.float32).T                # (K, F)
    wyt = wout[:, 1::2].astype(jnp.float32).T                # (K, F)
    bo_row = bout.astype(jnp.float32).reshape(1, F)          # (1, F)

    out = pl.pallas_call(
        spatial_softmax_kernel,
        out_shape=jax.ShapeDtypeStruct((nb, bb, F), jnp.float32),
        grid=(nb,),
        in_specs=[
            pl.BlockSpec((bb, C, HW), lambda b: (b, 0, 0)),
            pl.BlockSpec((K, C), lambda b: (0, 0)),
            pl.BlockSpec((K, 1), lambda b: (0, 0)),
            pl.BlockSpec((3, HW), lambda b: (0, 0)),
            pl.BlockSpec((K, F), lambda b: (0, 0)),
            pl.BlockSpec((K, F), lambda b: (0, 0)),
            pl.BlockSpec((1, F), lambda b: (0, 0)),
        ],
        out_specs=pl.BlockSpec((None, bb, F), lambda b: (b, 0, 0)),
        scratch_shapes=[pltpu.VMEM((bb, K), jnp.float32),
                        pltpu.VMEM((bb, K), jnp.float32)],
        compiler_params=pltpu.CompilerParams(
            dimension_semantics=("parallel",)),
    )(x2, wp_s, bp_s, pos_aug, wxt, wyt, bo_row)
    return out.reshape(b_pad, F)[:B]


def spatial_softmax_reference(x, wp, bp, wout, bout, temperature):
    """Pure-JAX reference mirroring the PyTorch forward (eval mode)."""
    B, C, H, W = x.shape
    K = wp.shape[0]
    proj = jnp.einsum("kc,bchw->bkhw", wp, x,
                      precision=jax.lax.Precision.HIGHEST)
    proj = proj + bp[None, :, None, None]
    feat = proj.reshape(B * K, H * W) / temperature
    attn = jax.nn.softmax(feat, axis=-1)
    xs = jnp.linspace(-1.0, 1.0, W, dtype=jnp.float32)
    ys = jnp.linspace(-1.0, 1.0, H, dtype=jnp.float32)
    px, py = jnp.meshgrid(xs, ys)
    ex = jnp.sum(px.reshape(1, -1) * attn, axis=1, keepdims=True)
    ey = jnp.sum(py.reshape(1, -1) * attn, axis=1, keepdims=True)
    kp = jnp.concatenate([ex, ey], axis=1).reshape(B, 2 * K)   # [x0,y0,x1,y1,..]
    return jnp.dot(kp, wout.T, precision=jax.lax.Precision.HIGHEST) + bout


if __name__ == "__main__":
    # module config: input_shape=(C,H,W)=(4,16,16), num_kp=32,
    # feature_dim=None -> 2*num_kp=64, temperature=1.0, eval mode (no noise),
    # output_variance=False.
    B, C, H, W = 2, 4, 16, 16
    K = 32
    F = 2 * K
    temperature = 1.0

    key = jax.random.PRNGKey(0)
    kx, kwp, kbp, kwo, kbo = jax.random.split(key, 5)
    x = jax.random.normal(kx, (B, C, H, W), dtype=jnp.float32)
    # synthetic parameters (Conv2d(C,K,1) squeezed and Linear(2K,F) shapes)
    wp = jax.random.normal(kwp, (K, C), dtype=jnp.float32) * 0.1
    bp = jax.random.normal(kbp, (K,), dtype=jnp.float32) * 0.1
    wout = jax.random.normal(kwo, (F, 2 * K), dtype=jnp.float32) * 0.1
    bout = jax.random.normal(kbo, (F,), dtype=jnp.float32) * 0.1

    out = spatial_softmax(x, wp, bp, wout, bout, temperature)
    out = jax.block_until_ready(out)

    ref = spatial_softmax_reference(x, wp, bp, wout, bout, temperature)
    ref = jax.block_until_ready(ref)

    assert out.shape == (B, F), out.shape
    assert jnp.allclose(out, ref, atol=1e-4, rtol=1e-4), (
        float(jnp.max(jnp.abs(out - ref))))

    # TODO(synk): training-time additive keypoint noise (noise_std>0) and the
    # optional output_variance covariance branch are not exercised (defaults off).
    print("KERNEL_OK")
</pallas_src>

<mosaic_0001>
module attributes {stable_mosaic.version = 11 : i64} {
  func.func @spatial_softmax_kernel(%arg0: i32, %arg1: memref<1x4x256xf32, #tpu.memory_space<vmem>>, %arg2: memref<32x4xf32, #tpu.memory_space<vmem>>, %arg3: memref<32x1xf32, #tpu.memory_space<vmem>>, %arg4: memref<3x256xf32, #tpu.memory_space<vmem>>, %arg5: memref<32x64xf32, #tpu.memory_space<vmem>>, %arg6: memref<32x64xf32, #tpu.memory_space<vmem>>, %arg7: memref<1x64xf32, #tpu.memory_space<vmem>>, %arg8: memref<1x1x64xf32, #tpu.memory_space<vmem>>, %arg9: memref<1x32xf32, #tpu.memory_space<vmem>>, %arg10: memref<1x32xf32, #tpu.memory_space<vmem>>) attributes {dimension_semantics = [#tpu.dimension_semantics<parallel>], iteration_bounds = array<i64: 2>, scalar_prefetch = 0 : i64, scratch_operands = 2 : i64, tpu.core_type = #tpu.core_type<tc>, window_params = [{transform_indices = @transform_0, window_bounds = array<i64: 1, 4, 256>}, {pipeline_mode = #tpu.pipeline_mode<synchronous>, transform_indices = @transform_1, window_bounds = array<i64: 32, 4>}, {pipeline_mode = #tpu.pipeline_mode<synchronous>, transform_indices = @transform_2, window_bounds = array<i64: 32, 1>}, {pipeline_mode = #tpu.pipeline_mode<synchronous>, transform_indices = @transform_3, window_bounds = array<i64: 3, 256>}, {pipeline_mode = #tpu.pipeline_mode<synchronous>, transform_indices = @transform_4, window_bounds = array<i64: 32, 64>}, {pipeline_mode = #tpu.pipeline_mode<synchronous>, transform_indices = @transform_5, window_bounds = array<i64: 32, 64>}, {pipeline_mode = #tpu.pipeline_mode<synchronous>, transform_indices = @transform_6, window_bounds = array<i64: 1, 64>}, {transform_indices = @transform_7, window_bounds = array<i64: 1, 1, 64>}]} {
    %c0 = arith.constant 0 : index
    %c0_0 = arith.constant 0 : index
    %0 = vector.load %arg2[%c0, %c0_0] : memref<32x4xf32, #tpu.memory_space<vmem>>, vector<32x4xf32>
    %c0_1 = arith.constant 0 : index
    %c0_2 = arith.constant 0 : index
    %1 = vector.load %arg3[%c0_1, %c0_2] : memref<32x1xf32, #tpu.memory_space<vmem>>, vector<32x1xf32>
    %c0_3 = arith.constant 0 : index
    %c0_4 = arith.constant 0 : index
    %2 = vector.load %arg4[%c0_3, %c0_4] : memref<3x256xf32, #tpu.memory_space<vmem>>, vector<3x256xf32>
    %c0_i32 = arith.constant 0 : i32
    %3 = arith.index_cast %c0_i32 : i32 to index
    %c0_5 = arith.constant 0 : index
    %c0_6 = arith.constant 0 : index
    %4 = vector.load %arg1[%3, %c0_5, %c0_6] : memref<1x4x256xf32, #tpu.memory_space<vmem>>, vector<1x4x256xf32>
    %5 = vector.shape_cast %4 : vector<1x4x256xf32> to vector<4x256xf32>
    %cst = arith.constant dense<0.000000e+00> : vector<32x256xf32>
    %6 = tpu.matmul %0, %5, %cst {dimension_numbers = #tpu.dot_dimension_numbers<[1], [0], [0], [1], [0, 0, 1, 1], [], []>} : vector<32x4xf32>, vector<4x256xf32>, vector<32x256xf32> -> vector<32x256xf32>
    %7 = vector.broadcast %1 : vector<32x1xf32> to vector<32x256xf32>
    %8 = arith.addf %6, %7 : vector<32x256xf32>
    %cst_7 = arith.constant dense<0xFF800000> : vector<32xf32>
    %9 = vector.multi_reduction <maximumf>, %8, %cst_7 [1] : vector<32x256xf32> to vector<32xf32>
    %10 = vector.shape_cast %9 : vector<32xf32> to vector<32x1xf32>
    %11 = vector.broadcast %10 : vector<32x1xf32> to vector<32x256xf32>
    %12 = arith.subf %8, %11 : vector<32x256xf32>
    %13 = math.exp %12 : vector<32x256xf32>
    %cst_8 = arith.constant dense<0.000000e+00> : vector<3x32xf32>
    %14 = tpu.matmul %2, %13, %cst_8 {dimension_numbers = #tpu.dot_dimension_numbers<[1], [1], [0], [0], [0, 0, 1, 0], [], []>} : vector<3x256xf32>, vector<32x256xf32>, vector<3x32xf32> -> vector<3x32xf32>
    %15 = vector.extract_strided_slice %14 {offsets = [0, 0], sizes = [1, 32], strides = [1, 1]} : vector<3x32xf32> to vector<1x32xf32>
    %cst_9 = arith.constant 1.000000e+00 : f32
    %16 = vector.broadcast %cst_9 : f32 to vector<1x32xf32>
    %17 = arith.divf %16, %15 : vector<1x32xf32>
    %18 = vector.extract_strided_slice %14 {offsets = [1, 0], sizes = [1, 32], strides = [1, 1]} : vector<3x32xf32> to vector<1x32xf32>
    %19 = arith.mulf %18, %17 : vector<1x32xf32>
    %20 = arith.index_cast %c0_i32 : i32 to index
    %c0_10 = arith.constant 0 : index
    %21 = vector.load %arg9[%20, %c0_10] : memref<1x32xf32, #tpu.memory_space<vmem>>, vector<1x32xf32>
    tpu.vector_store %arg9[%20, %c0_10], %19 {strides = array<i32>} : memref<1x32xf32, #tpu.memory_space<vmem>>, vector<1x32xf32>,
    %22 = vector.extract_strided_slice %14 {offsets = [2, 0], sizes = [1, 32], strides = [1, 1]} : vector<3x32xf32> to vector<1x32xf32>
    %23 = arith.mulf %22, %17 : vector<1x32xf32>
    %24 = arith.index_cast %c0_i32 : i32 to index
    %c0_11 = arith.constant 0 : index
    %25 = vector.load %arg10[%24, %c0_11] : memref<1x32xf32, #tpu.memory_space<vmem>>, vector<1x32xf32>
    tpu.vector_store %arg10[%24, %c0_11], %23 {strides = array<i32>} : memref<1x32xf32, #tpu.memory_space<vmem>>, vector<1x32xf32>,
    %c1_i32 = arith.constant 1 : i32
    %c0_12 = arith.constant 0 : index
    %c0_13 = arith.constant 0 : index
    %26 = vector.load %arg9[%c0_12, %c0_13] : memref<1x32xf32, #tpu.memory_space<vmem>>, vector<1x32xf32>
    %c0_14 = arith.constant 0 : index
    %c0_15 = arith.constant 0 : index
    %27 = vector.load %arg5[%c0_14, %c0_15] : memref<32x64xf32, #tpu.memory_space<vmem>>, vector<32x64xf32>
    %cst_16 = arith.constant dense<0.000000e+00> : vector<1x64xf32>
    %28 = tpu.matmul %26, %27, %cst_16 {dimension_numbers = #tpu.dot_dimension_numbers<[1], [0], [0], [1], [0, 0, 1, 1], [], []>} : vector<1x32xf32>, vector<32x64xf32>, vector<1x64xf32> -> vector<1x64xf32>
    %c0_17 = arith.constant 0 : index
    %c0_18 = arith.constant 0 : index
    %29 = vector.load %arg10[%c0_17, %c0_18] : memref<1x32xf32, #tpu.memory_space<vmem>>, vector<1x32xf32>
    %c0_19 = arith.constant 0 : index
    %c0_20 = arith.constant 0 : index
    %30 = vector.load %arg6[%c0_19, %c0_20] : memref<32x64xf32, #tpu.memory_space<vmem>>, vector<32x64xf32>
    %cst_21 = arith.constant dense<0.000000e+00> : vector<1x64xf32>
    %31 = tpu.matmul %29, %30, %cst_21 {dimension_numbers = #tpu.dot_dimension_numbers<[1], [0], [0], [1], [0, 0, 1, 1], [], []>} : vector<1x32xf32>, vector<32x64xf32>, vector<1x64xf32> -> vector<1x64xf32>
    %32 = arith.addf %28, %31 : vector<1x64xf32>
    %c0_22 = arith.constant 0 : index
    %c0_23 = arith.constant 0 : index
    %33 = vector.load %arg7[%c0_22, %c0_23] : memref<1x64xf32, #tpu.memory_space<vmem>>, vector<1x64xf32>
    %34 = arith.addf %32, %33 : vector<1x64xf32>
    %c0_24 = arith.constant 0 : index
    %c0_25 = arith.constant 0 : index
    %c0_26 = arith.constant 0 : index
    %35 = vector.load %arg8[%c0_24, %c0_25, %c0_26] : memref<1x1x64xf32, #tpu.memory_space<vmem>>, vector<1x1x64xf32>
    %36 = vector.shape_cast %35 : vector<1x1x64xf32> to vector<1x64xf32>
    %37 = vector.shape_cast %34 : vector<1x64xf32> to vector<1x1x64xf32>
    tpu.vector_store %arg8[%c0_24, %c0_25, %c0_26], %37 {strides = array<i32>} : memref<1x1x64xf32, #tpu.memory_space<vmem>>, vector<1x1x64xf32>,
    return
  }
  func.func @transform_0(%arg0: i32) -> (i32, i32, i32) {
    %c0_i32 = arith.constant 0 : i32
    %c0_i32_0 = arith.constant 0 : i32
    %c0_i32_1 = arith.constant 0 : i32
    return %arg0, %c0_i32, %c0_i32_0 : i32, i32, i32
  }
  func.func @transform_1(%arg0: i32) -> (i32, i32) {
    %c0_i32 = arith.constant 0 : i32
    %c0_i32_0 = arith.constant 0 : i32
    %c0_i32_1 = arith.constant 0 : i32
    return %c0_i32, %c0_i32_0 : i32, i32
  }
  func.func @transform_2(%arg0: i32) -> (i32, i32) {
    %c0_i32 = arith.constant 0 : i32
    %c0_i32_0 = arith.constant 0 : i32
    %c0_i32_1 = arith.constant 0 : i32
    return %c0_i32, %c0_i32_0 : i32, i32
  }
  func.func @transform_3(%arg0: i32) -> (i32, i32) {
    %c0_i32 = arith.constant 0 : i32
    %c0_i32_0 = arith.constant 0 : i32
    %c0_i32_1 = arith.constant 0 : i32
    return %c0_i32, %c0_i32_0 : i32, i32
  }
  func.func @transform_4(%arg0: i32) -> (i32, i32) {
    %c0_i32 = arith.constant 0 : i32
    %c0_i32_0 = arith.constant 0 : i32
    %c0_i32_1 = arith.constant 0 : i32
    return %c0_i32, %c0_i32_0 : i32, i32
  }
  func.func @transform_5(%arg0: i32) -> (i32, i32) {
    %c0_i32 = arith.constant 0 : i32
    %c0_i32_0 = arith.constant 0 : i32
    %c0_i32_1 = arith.constant 0 : i32
    return %c0_i32, %c0_i32_0 : i32, i32
  }
  func.func @transform_6(%arg0: i32) -> (i32, i32) {
    %c0_i32 = arith.constant 0 : i32
    %c0_i32_0 = arith.constant 0 : i32
    %c0_i32_1 = arith.constant 0 : i32
    return %c0_i32, %c0_i32_0 : i32, i32
  }
  func.func @transform_7(%arg0: i32) -> (i32, i32, i32) {
    %c0_i32 = arith.constant 0 : i32
    %c0_i32_0 = arith.constant 0 : i32
    %c0_i32_1 = arith.constant 0 : i32
    return %arg0, %c0_i32, %c0_i32_0 : i32, i32, i32
  }
}

</mosaic_0001>

<llo_original>
// kernel: tpu_custom_call.1
$region0: #{tpu_custom_call.1}
  #allocation0 [shape = 'u32[]', space=smem, size = 0x4, offset = 0x4, fixed_abs, tag = 'smem constant byte address 0x4 - core index']
  #allocation1 [shape = 'u32[144,128]{1,0:T(1,128)}', space=vmem, size = 0x12000, scoped, tag = 'internal scratch']
  #allocation2 [shape = 'f32[1,32]{1,0:T(1,128)}', space=vmem, size = 0x200, scoped, tag = 'scratch operand']
  #allocation3 [shape = 'f32[1,32]{1,0:T(1,128)}', space=vmem, size = 0x200, scoped, tag = 'scratch operand']
  %s0 = inlined_call_operand.hbm [shape: f32[2,4,256], index: 0, kind: input, shape index: {}]
  %s1 = inlined_call_operand.vmem [shape: f32[32,4], index: 1, kind: input, shape index: {}]
  %s2 = inlined_call_operand.vmem [shape: f32[32,1], index: 2, kind: input, shape index: {}]
  %s3 = inlined_call_operand.vmem [shape: f32[3,256], index: 3, kind: input, shape index: {}]
  %s4 = inlined_call_operand.vmem [shape: f32[32,64], index: 4, kind: input, shape index: {}]
  %s5 = inlined_call_operand.vmem [shape: f32[32,64], index: 5, kind: input, shape index: {}]
  %s6 = inlined_call_operand.vmem [shape: f32[1,64], index: 6, kind: input, shape index: {}]
  %s7 = inlined_call_operand.hbm [shape: f32[2,1,64], index: 7, kind: output, shape index: {}]
  %s8 = sld [smem:[#allocation0]]
  $region65: #{tpu_custom_call.1} parent=0
    _
  %s10 = ssub.s32 1, %s8
  %s11 = scalar_select 0, %s10, %s8
  $region1: #{tpu_custom_call.1} parent=0
    #allocation4 [shape = 'u8[8192]{0}', space=vmem, size = 0x2000, scoped, tag = 'input window, operand 0']
    #allocation5 [shape = 's32[2]{0}', space=sflag, size = 0x8, scoped, tag = 'scoped memory for tpu_custom_call.1']
    #allocation6 [shape = 's32[2]{0}', space=sflag, size = 0x8, scoped, tag = 'scoped memory for tpu_custom_call.1']
    #allocation7 [shape = 'u8[1024]{0}', space=vmem, size = 0x400, scoped, tag = 'output window, operand 0']
    %12 = vsyncpa [#allocation5], 0
    %s13 = scalar_lea.sflag [#allocation5], 1
    %14 = vsyncpa %s13, 0
    %15 = vsyncpa [#allocation6], 0
    %s16 = scalar_lea.sflag [#allocation6], 1
    %17 = vsyncpa %s16, 0
    loop: start=0, step=1, limit=4
    $region2: #{tpu_custom_call.1} parent=1 // loop_pre_header
      _
    $region3: #{tpu_custom_call.1} parent=1 // loop_header
      %s19 = sphi 0, %s23
      %p20 = scmp.ge.s32.totalorder %s19, 4
      %s29 = sphi 0, %s31
      %s32 = sphi 0, %s29
      %s33 = sphi 0, %s32
      %s49 = sphi 0, %s33
      %s53 = sphi 0, %s53
      %s55 = sphi 0, %s53
      %s56 = sphi 0, %s55
      %s70 = sphi 0, %s56
      %s74 = sphi 0, %s74
      %s76 = sphi 0, %s74
      %s77 = sphi 0, %s76
      %s91 = sphi 0, %s77
      %s95 = sphi 0, %s95
      %s97 = sphi 0, %s95
      %s98 = sphi 0, %s97
      %s112 = sphi 0, %s98
      %s116 = sphi 0, %s116
      %s118 = sphi 0, %s116
      %s119 = sphi 0, %s118
      %s133 = sphi 0, %s119
      %s137 = sphi 0, %s137
      %s139 = sphi 0, %s137
      %s140 = sphi 0, %s139
      %s154 = sphi 0, %s140
      %s158 = sphi 0, %s158
      %s160 = sphi 0, %s158
      %s161 = sphi 0, %s160
      %s175 = sphi 0, %s161
      %s181 = sphi 0, %s183
      %s184 = sphi 0, %s181
      %s185 = sphi 0, %s184
      %s201 = sphi 0, %s185
    $region4: #{tpu_custom_call.1} parent=1 // loop_header_branch
      %22 = sbr.rel (%p20) target = $region8
    $region5: #{tpu_custom_call.1} parent=1 // loop_body
      %s24 = ssub.s32 %s19, 1
      %s25 = ssub.s32 %s19, 2
      %s26 = sadd.s32 %s19, 1
      %s27 = ssub.s32 %s19, %s26
      %p28 = scmp.eq.s32.totalorder %s27, 0
      %s30 = sadd.s32 %s29, 1
      %s31 = scalar_select %p28, %s29, %s30
      %p34 = pneg %p28
      %p35 = scmp.eq.s32.totalorder %s19, 1
      %p36 = por %p34, %p35
      %p37 = scmp.ne.s32.totalorder %s29, %s32
      %p38 = scmp.eq.s32.totalorder %s19, 0
      %p39 = por %p37, %p38
      %p40 = scmp.ne.s32.totalorder %s29, %s32
      %p41 = scmp.eq.s32.totalorder %s24, 1
      %p42 = por %p40, %p41
      %p43 = scmp.ne.s32.totalorder %s32, %s33
      %p44 = scmp.eq.s32.totalorder %s24, 0
      %p45 = por %p43, %p44
      %p46 = scmp.ne.s32.totalorder %s32, %s33
      %p47 = scmp.eq.s32.totalorder %s25, 1
      %p48 = por %p46, %p47
      %p50 = scmp.ne.s32.totalorder %s33, %s49
      %p51 = scmp.eq.s32.totalorder %s25, 0
      %p52 = por %p50, %p51
      %s54 = sadd.s32 %s53, 1
      %p57 = scmp.eq.s32.totalorder %s19, 1
      %p58 = scmp.ne.s32.totalorder %s53, %s55
      %p59 = scmp.eq.s32.totalorder %s19, 0
      %p60 = por %p58, %p59
      %p61 = scmp.ne.s32.totalorder %s53, %s55
      %p62 = scmp.eq.s32.totalorder %s24, 1
      %p63 = por %p61, %p62
      %p64 = scmp.ne.s32.totalorder %s55, %s56
      %p65 = scmp.eq.s32.totalorder %s24, 0
      %p66 = por %p64, %p65
      %p67 = scmp.ne.s32.totalorder %s55, %s56
      %p68 = scmp.eq.s32.totalorder %s25, 1
      %p69 = por %p67, %p68
      %p71 = scmp.ne.s32.totalorder %s56, %s70
      %p72 = scmp.eq.s32.totalorder %s25, 0
      %p73 = por %p71, %p72
      %s75 = sadd.s32 %s74, 1
      %p78 = scmp.eq.s32.totalorder %s19, 1
      %p79 = scmp.ne.s32.totalorder %s74, %s76
      %p80 = scmp.eq.s32.totalorder %s19, 0
      %p81 = por %p79, %p80
      %p82 = scmp.ne.s32.totalorder %s74, %s76
      %p83 = scmp.eq.s32.totalorder %s24, 1
      %p84 = por %p82, %p83
      %p85 = scmp.ne.s32.totalorder %s76, %s77
      %p86 = scmp.eq.s32.totalorder %s24, 0
      %p87 = por %p85, %p86
      %p88 = scmp.ne.s32.totalorder %s76, %s77
      %p89 = scmp.eq.s32.totalorder %s25, 1
      %p90 = por %p88, %p89
      %p92 = scmp.ne.s32.totalorder %s77, %s91
      %p93 = scmp.eq.s32.totalorder %s25, 0
      %p94 = por %p92, %p93
      %s96 = sadd.s32 %s95, 1
      %p99 = scmp.eq.s32.totalorder %s19, 1
      %p100 = scmp.ne.s32.totalorder %s95, %s97
      %p101 = scmp.eq.s32.totalorder %s19, 0
      %p102 = por %p100, %p101
      %p103 = scmp.ne.s32.totalorder %s95, %s97
      %p104 = scmp.eq.s32.totalorder %s24, 1
      %p105 = por %p103, %p104
      %p106 = scmp.ne.s32.totalorder %s97, %s98
      %p107 = scmp.eq.s32.totalorder %s24, 0
      %p108 = por %p106, %p107
      %p109 = scmp.ne.s32.totalorder %s97, %s98
      %p110 = scmp.eq.s32.totalorder %s25, 1
      %p111 = por %p109, %p110
      %p113 = scmp.ne.s32.totalorder %s98, %s112
      %p114 = scmp.eq.s32.totalorder %s25, 0
      %p115 = por %p113, %p114
      %s117 = sadd.s32 %s116, 1
      %p120 = scmp.eq.s32.totalorder %s19, 1
      %p121 = scmp.ne.s32.totalorder %s116, %s118
      %p122 = scmp.eq.s32.totalorder %s19, 0
      %p123 = por %p121, %p122
      %p124 = scmp.ne.s32.totalorder %s116, %s118
      %p125 = scmp.eq.s32.totalorder %s24, 1
      %p126 = por %p124, %p125
      %p127 = scmp.ne.s32.totalorder %s118, %s119
      %p128 = scmp.eq.s32.totalorder %s24, 0
      %p129 = por %p127, %p128
      %p130 = scmp.ne.s32.totalorder %s118, %s119
      %p131 = scmp.eq.s32.totalorder %s25, 1
      %p132 = por %p130, %p131
      %p134 = scmp.ne.s32.totalorder %s119, %s133
      %p135 = scmp.eq.s32.totalorder %s25, 0
      %p136 = por %p134, %p135
      %s138 = sadd.s32 %s137, 1
      %p141 = scmp.eq.s32.totalorder %s19, 1
      %p142 = scmp.ne.s32.totalorder %s137, %s139
      %p143 = scmp.eq.s32.totalorder %s19, 0
      %p144 = por %p142, %p143
      %p145 = scmp.ne.s32.totalorder %s137, %s139
      %p146 = scmp.eq.s32.totalorder %s24, 1
      %p147 = por %p145, %p146
      %p148 = scmp.ne.s32.totalorder %s139, %s140
      %p149 = scmp.eq.s32.totalorder %s24, 0
      %p150 = por %p148, %p149
      %p151 = scmp.ne.s32.totalorder %s139, %s140
      %p152 = scmp.eq.s32.totalorder %s25, 1
      %p153 = por %p151, %p152
      %p155 = scmp.ne.s32.totalorder %s140, %s154
      %p156 = scmp.eq.s32.totalorder %s25, 0
      %p157 = por %p155, %p156
      %s159 = sadd.s32 %s158, 1
      %p162 = scmp.eq.s32.totalorder %s19, 1
      %p163 = scmp.ne.s32.totalorder %s158, %s160
      %p164 = scmp.eq.s32.totalorder %s19, 0
      %p165 = por %p163, %p164
      %p166 = scmp.ne.s32.totalorder %s158, %s160
      %p167 = scmp.eq.s32.totalorder %s24, 1
      %p168 = por %p166, %p167
      %p169 = scmp.ne.s32.totalorder %s160, %s161
      %p170 = scmp.eq.s32.totalorder %s24, 0
      %p171 = por %p169, %p170
      %p172 = scmp.ne.s32.totalorder %s160, %s161
      %p173 = scmp.eq.s32.totalorder %s25, 1
      %p174 = por %p172, %p173
      %p176 = scmp.ne.s32.totalorder %s161, %s175
      %p177 = scmp.eq.s32.totalorder %s25, 0
      %p178 = por %p176, %p177
      %s179 = ssub.s32 %s19, %s26
      %p180 = scmp.eq.s32.totalorder %s179, 0
      %s182 = sadd.s32 %s181, 1
      %s183 = scalar_select %p180, %s181, %s182
      %p186 = pneg %p180
      %p187 = scmp.eq.s32.totalorder %s19, 1
      %p188 = por %p186, %p187
      %p189 = scmp.ne.s32.totalorder %s181, %s184
      %p190 = scmp.eq.s32.totalorder %s19, 0
      %p191 = por %p189, %p190
      %p192 = scmp.ne.s32.totalorder %s181, %s184
      %p193 = scmp.eq.s32.totalorder %s24, 1
      %p194 = por %p192, %p193
      %p195 = scmp.ne.s32.totalorder %s184, %s185
      %p196 = scmp.eq.s32.totalorder %s24, 0
      %p197 = por %p195, %p196
      %p198 = scmp.ne.s32.totalorder %s184, %s185
      %p199 = scmp.eq.s32.totalorder %s25, 1
      %p200 = por %p198, %p199
      %p202 = scmp.ne.s32.totalorder %s185, %s201
      %p203 = scmp.eq.s32.totalorder %s25, 0
      %p204 = por %p202, %p203
      %p205 = scmp.le.s32.totalorder 1, %s19
      %p206 = scmp.lt.s32.totalorder %s19, 3
      %p207 = pnand %p205, %p206
      %p208 = pneg %p207
      // Predicated region
      $region9: #{tpu_custom_call.1} parent=5 // pred_check
        _
      $region10: #{tpu_custom_call.1} parent=5 // pred_check_branch
        %210 = sbr.rel (%p207) target = $region12
      $region11: #{tpu_custom_call.1} parent=5 // pred_region
        %s211 = ssub.s32 %s19, 1
        // Predicated region
        $region13: #{tpu_custom_call.1} parent=11 // pred_check
          %p212 = pneg %p66
        $region14: #{tpu_custom_call.1} parent=11 // pred_check_branch
          %214 = sbr.rel (%p212) target = $region16
        $region15: #{tpu_custom_call.1} parent=11 // pred_region
          _
        $region16: #{tpu_custom_call.1} parent=11 // pred_fallthru
          _
        // Predicated region
        $region17: #{tpu_custom_call.1} parent=11 // pred_check
          %p215 = pneg %p87
        $region18: #{tpu_custom_call.1} parent=11 // pred_check_branch
          %217 = sbr.rel (%p215) target = $region20
        $region19: #{tpu_custom_call.1} parent=11 // pred_region
          _
        $region20: #{tpu_custom_call.1} parent=11 // pred_fallthru
          _
        // Predicated region
        $region21: #{tpu_custom_call.1} parent=11 // pred_check
          %p218 = pneg %p108
        $region22: #{tpu_custom_call.1} parent=11 // pred_check_branch
          %220 = sbr.rel (%p218) target = $region24
        $region23: #{tpu_custom_call.1} parent=11 // pred_region
          _
        $region24: #{tpu_custom_call.1} parent=11 // pred_fallthru
          _
        // Predicated region
        $region25: #{tpu_custom_call.1} parent=11 // pred_check
          %p221 = pneg %p129
        $region26: #{tpu_custom_call.1} parent=11 // pred_check_branch
          %223 = sbr.rel (%p221) target = $region28
        $region27: #{tpu_custom_call.1} parent=11 // pred_region
          _
        $region28: #{tpu_custom_call.1} parent=11 // pred_fallthru
          _
        // Predicated region
        $region29: #{tpu_custom_call.1} parent=11 // pred_check
          %p224 = pneg %p150
        $region30: #{tpu_custom_call.1} parent=11 // pred_check_branch
          %226 = sbr.rel (%p224) target = $region32
        $region31: #{tpu_custom_call.1} parent=11 // pred_region
          _
        $region32: #{tpu_custom_call.1} parent=11 // pred_fallthru
          _
        // Predicated region
        $region33: #{tpu_custom_call.1} parent=11 // pred_check
          %p227 = pneg %p171
        $region34: #{tpu_custom_call.1} parent=11 // pred_check_branch
          %229 = sbr.rel (%p227) target = $region36
        $region35: #{tpu_custom_call.1} parent=11 // pred_region
          _
        $region36: #{tpu_custom_call.1} parent=11 // pred_fallthru
          _
      $region12: #{tpu_custom_call.1} parent=5 // pred_fallthru
        _
      %p230 = scmp.lt.s32.totalorder %s19, 2
      // Predicated region
      $region37: #{tpu_custom_call.1} parent=5 // pred_check
        %p231 = pneg %p230
      $region38: #{tpu_custom_call.1} parent=5 // pred_check_branch
        %233 = sbr.rel (%p231) target = $region40
      $region39: #{tpu_custom_call.1} parent=5 // pred_region
        // Predicated region
        $region41: #{tpu_custom_call.1} parent=39 // pred_check
          %p234 = pneg %p39
        $region42: #{tpu_custom_call.1} parent=39 // pred_check_branch
          %236 = sbr.rel (%p234) target = $region44
        $region43: #{tpu_custom_call.1} parent=39 // pred_region
          %s237 = sand.u32 %s29, 1
          %s238 = scalar_lea.sflag [#allocation5], %s237
          %s239 = sand.u32 %s29, 1
          %s240 = smul.addr %s239, 8
          %s241 = scalar_lea.vmem [#allocation4], %s240
          %s243 = ssub.s32 128, 128
          %244 = vsyncadd %s238, %s243
          %s245 = smul.addr %s19, 2
          %s246 = smul.addr %s245, 64
          %s247 = scalar_lea.hbm %s0, %s246
          %s249 = sshll.u32 %s241, 4
          %s250 = int_to_ptr.vmem [resolvable:$true] %s249
          %252 = dma.hbm_to_vmem [thread:$0]  %s247, 128, %s250, %s238
        $region44: #{tpu_custom_call.1} parent=39 // pred_fallthru
          _
      $region40: #{tpu_custom_call.1} parent=5 // pred_fallthru
        _
      %p253 = scmp.le.s32.totalorder 1, %s19
      %p254 = scmp.lt.s32.totalorder %s19, 3
      %p255 = pnand %p253, %p254
      %p256 = pneg %p255
      // Predicated region
      $region45: #{tpu_custom_call.1} parent=5 // pred_check
        _
      $region46: #{tpu_custom_call.1} parent=5 // pred_check_branch
        %258 = sbr.rel (%p255) target = $region48
      $region47: #{tpu_custom_call.1} parent=5 // pred_region
        %s259 = ssub.s32 %s19, 1
        %s260 = sand.u32 %s32, 1
        %s261 = scalar_lea.sflag [#allocation5], %s260
        %s262 = sand.u32 %s32, 1
        %s263 = smul.addr %s262, 8
        %s264 = scalar_lea.vmem [#allocation4], %s263
        // Predicated region
        $region49: #{tpu_custom_call.1} parent=47 // pred_check
          %p265 = pneg %p45
        $region50: #{tpu_custom_call.1} parent=47 // pred_check_branch
          %267 = sbr.rel (%p265) target = $region52
        $region51: #{tpu_custom_call.1} parent=47 // pred_region
          %268 = dma.done %s261, 128
        $region52: #{tpu_custom_call.1} parent=47 // pred_fallthru
          _
        %s269 = sand.u32 %s32, 1
        %s270 = scalar_lea.sflag [#allocation5], %s269
        %s271 = sand.u32 %s32, 1
        %s272 = smul.addr %s271, 8
        %s273 = scalar_lea.vmem [#allocation4], %s272
        %p274 = pneg %p45
        %p275 = pneg %p42
        %p276 = pneg %p66
        %p277 = pneg %p63
        %p278 = pneg %p87
        %p279 = pneg %p84
        %p280 = pneg %p108
        %p281 = pneg %p105
        %p282 = pneg %p129
        %p283 = pneg %p126
        %p284 = pneg %p150
        %p285 = pneg %p147
        %p286 = pneg %p171
        %p287 = pneg %p168
        %p288 = pneg %p197
        %p289 = pneg %p194
        %s290 = sand.u32 %s184, 1
        %s291 = scalar_lea.sflag [#allocation6], %s290
        %s292 = sand.u32 %s184, 1
        %s293 = scalar_lea.vmem [#allocation7], %s292
        %v294 = vld [vmem:[%s1] sm:$0xff]
        %v295 = vld [vmem:[%s1 + $0x8] sm:$0xff]
        %v296 = vld [vmem:[%s1 + $0x10] sm:$0xff]
        %v297 = vld [vmem:[%s1 + $0x18] sm:$0xff]
        %v298 = vld [vmem:[%s2] sm:$0xff]
        %v299 = vld [vmem:[%s2 + $0x8] sm:$0xff]
        %v300 = vld [vmem:[%s2 + $0x10] sm:$0xff]
        %v301 = vld [vmem:[%s2 + $0x18] sm:$0xff]
        %v302 = vld [vmem:[%s3] sm:$0x77]
        %v303 = vld [vmem:[%s264] sm:$0xff]
        %305 = vset.pattern.permute.xlu0 0
        %306 = vperm.xlu0 %305, %v298
        %v307 = vpop.permute.xlu0 %306
        %310 = vset.pattern.permute.xlu0 0
        %311 = vperm.xlu0 %310, %v299
        %v312 = vpop.permute.xlu0 %311
        %315 = vset.pattern.permute.xlu0 0
        %316 = vperm.xlu0 %315, %v300
        %v317 = vpop.permute.xlu0 %316
        %320 = vset.pattern.permute.xlu0 0
        %321 = vperm.xlu0 %320, %v301
        %v322 = vpop.permute.xlu0 %321
        %v325 = vcombine.high %v303, %v303
        %vm326 = vcmask 31744
        %v328 = vsel %vm326, %v294, 0
        %v331 = vsel %vm326, %v295, 0
        %v334 = vsel %vm326, %v296, 0
        %v337 = vsel %vm326, %v297, 0
        %vm339 = vcmask 1043456
        %v340 = vsel %vm339, %v303, 0
        %v342 = vsel %vm339, %v325, 0
        %344 = vmatprep.subr.mxu0 %v342
        %345 = vmatpush1.msra.mxu0 %v340
        %346 = vmatprep.subr.mxu0 0.0
        %347 = vmatpush1.msra.mxu0 0.0
        %348 = vmatprep.subr.mxu0 0.0
        %349 = vmatpush1.msra.mxu0 0.0
        %350 = vmatprep.subr.mxu0 0.0
        %351 = vmatpush1.msra.mxu0 0.0
        %352 = vmatprep.subr.mxu0 0.0
        %353 = vmatpush1.msra.mxu0 0.0
        %354 = vmatprep.subr.mxu0 0.0
        %355 = vmatpush1.msra.mxu0 0.0
        %356 = vmatprep.subr.mxu0 0.0
        %357 = vmatpush1.msra.mxu0 0.0
        %358 = vmatprep.subr.mxu0 0.0
        %359 = vmatpush1.msra.mxu0 0.0
        %360 = vmatprep.subr.mxu0 0.0
        %361 = vmatpush1.msra.mxu0 0.0
        %362 = vmatprep.subr.mxu0 0.0
        %363 = vmatpush1.msra.mxu0 0.0
        %364 = vmatprep.subr.mxu0 0.0
        %365 = vmatpush1.msra.mxu0 0.0
        %366 = vmatprep.subr.mxu0 0.0
        %367 = vmatpush1.msra.mxu0 0.0
        %368 = vmatprep.subr.mxu0 0.0
        %369 = vmatpush1.msra.mxu0 0.0
        %370 = vmatprep.subr.mxu0 0.0
        %371 = vmatpush1.msra.mxu0 0.0
        %372 = vmatprep.subr.mxu0 0.0
        %373 = vmatpush1.msra.mxu0 0.0
        %374 = vmatprep.subr.mxu0 0.0
        %375 = vmatpush1.msra.mxu0 0.0
        %376 = vmatprep.subr.mxu0 0.0
        %377 = vmatpush1.msra.mxu0 0.0
        %378 = vmatprep.subr.mxu0 0.0
        %379 = vmatpush1.msra.mxu0 0.0
        %380 = vmatprep.subr.mxu0 0.0
        %381 = vmatpush1.msra.mxu0 0.0
        %382 = vmatprep.subr.mxu0 0.0
        %383 = vmatpush1.msra.mxu0 0.0
        %384 = vmatprep.subr.mxu0 0.0
        %385 = vmatpush1.msra.mxu0 0.0
        %386 = vmatprep.subr.mxu0 0.0
        %387 = vmatpush1.msra.mxu0 0.0
        %388 = vmatprep.subr.mxu0 0.0
        %389 = vmatpush1.msra.mxu0 0.0
        %390 = vmatprep.subr.mxu0 0.0
        %391 = vmatpush1.msra.mxu0 0.0
        %392 = vmatprep.subr.mxu0 0.0
        %393 = vmatpush1.msra.mxu0 0.0
        %394 = vmatprep.subr.mxu0 0.0
        %395 = vmatpush1.msra.mxu0 0.0
        %396 = vmatprep.subr.mxu0 0.0
        %397 = vmatpush1.msra.mxu0 0.0
        %398 = vmatprep.subr.mxu0 0.0
        %399 = vmatpush1.msra.mxu0 0.0
        %400 = vmatprep.subr.mxu0 0.0
        %401 = vmatpush1.msra.mxu0 0.0
        %402 = vmatprep.subr.mxu0 0.0
        %403 = vmatpush1.msra.mxu0 0.0
        %404 = vmatprep.subr.mxu0 0.0
        %405 = vmatpush1.msra.mxu0 0.0
        %406 = vmatprep.subr.mxu0 0.0
        %407 = vmatpush1.msra.mxu0 0.0
        %408 = vmatprep.mubr.f32.mxu0 0.0
        %409 = vmatmul.mubr.f32.gmra.mrb[0].mxu0 %v328
        %v410 = vpop.f32.mrb[0].mxu0
        %v411 = vadd.f32 %v307, %v410
        %v412 = vpop.f32.mrb[0].mxu0
        %v413 = vadd.f32 %v307, %v412
        %414 = vmatprep.mubr.f32.mxu0 0.0
        %415 = vmatmul.mubr.f32.gmra.mrb[0].mxu0 %v331
        %v416 = vpop.f32.mrb[0].mxu0
        %v417 = vadd.f32 %v312, %v416
        %v418 = vpop.f32.mrb[0].mxu0
        %v419 = vadd.f32 %v312, %v418
        %420 = vmatprep.mubr.f32.mxu0 0.0
        %421 = vmatmul.mubr.f32.gmra.mrb[0].mxu0 %v334
        %v422 = vpop.f32.mrb[0].mxu0
        %v423 = vadd.f32 %v317, %v422
        %v424 = vpop.f32.mrb[0].mxu0
        %v425 = vadd.f32 %v317, %v424
        %426 = vmatprep.mubr.f32.mxu0 0.0
        %427 = vmatmul.mubr.f32.gmra.mrb[0].mxu0 %v337
        %v428 = vpop.f32.mrb[0].mxu0
        %v429 = vadd.f32 %v322, %v428
        %v430 = vpop.f32.mrb[0].mxu0
        %v431 = vadd.f32 %v322, %v430
        %432 = vdwg.mxu0
        %v433 = vmax.f32 %v411, %v413
        %434 = vmax.xlane.f32.xlu0 %v433
        %v435 = vpop.xlane.xlu0 %434
        %v436 = vmax.f32 %v417, %v419
        %437 = vmax.xlane.f32.xlu0 %v436
        %v438 = vpop.xlane.xlu0 %437
        %v439 = vmax.f32 %v423, %v425
        %440 = vmax.xlane.f32.xlu0 %v439
        %v441 = vpop.xlane.xlu0 %440
        %v442 = vmax.f32 %v429, %v431
        %443 = vmax.xlane.f32.xlu0 %v442
        %v444 = vpop.xlane.xlu0 %443
        %v445 = vsub.f32 %v411, %v435
        %v446 = vsub.f32 %v413, %v435
        %v447 = vsub.f32 %v417, %v438
        %v448 = vsub.f32 %v419, %v438
        %v449 = vsub.f32 %v423, %v441
        %v450 = vsub.f32 %v425, %v441
        %v451 = vsub.f32 %v429, %v444
        %v452 = vsub.f32 %v431, %v444
        %v453 = vmul.f32 %v445, 1.442695
        %v454 = vpow.pop %v453
        %v455 = vmul.f32 %v446, 1.442695
        %v456 = vpow.pop %v455
        %v457 = vmul.f32 %v447, 1.442695
        %v458 = vpow.pop %v457
        %v459 = vmul.f32 %v448, 1.442695
        %v460 = vpow.pop %v459
        %v461 = vmul.f32 %v449, 1.442695
        %v462 = vpow.pop %v461
        %v463 = vmul.f32 %v450, 1.442695
        %v464 = vpow.pop %v463
        %v465 = vmul.f32 %v451, 1.442695
        %v466 = vpow.pop %v465
        %v467 = vmul.f32 %v452, 1.442695
        %v468 = vpow.pop %v467
        %v470 = vcombine.high %v302, %v302
        %472 = vmatprep.subr.mxu0 %v456
        %473 = vmatpush1.xpose.msra.mxu0 %v454
        %474 = vmatprep.subr.mxu0 %v460
        %475 = vmatpush1.xpose.msra.mxu0 %v458
        %476 = vmatprep.subr.mxu0 %v464
        %477 = vmatpush1.xpose.msra.mxu0 %v462
        %478 = vmatprep.subr.mxu0 %v468
        %479 = vmatpush1.xpose.msra.mxu0 %v466
        %480 = vmatprep.subr.mxu0 0.0
        %481 = vmatpush1.xpose.msra.mxu0 0.0
        %482 = vmatprep.subr.mxu0 0.0
        %483 = vmatpush1.xpose.msra.mxu0 0.0
        %484 = vmatprep.subr.mxu0 0.0
        %485 = vmatpush1.xpose.msra.mxu0 0.0
        %486 = vmatprep.subr.mxu0 0.0
        %487 = vmatpush1.xpose.msra.mxu0 0.0
        %488 = vmatprep.subr.mxu0 0.0
        %489 = vmatpush1.xpose.msra.mxu0 0.0
        %490 = vmatprep.subr.mxu0 0.0
        %491 = vmatpush1.xpose.msra.mxu0 0.0
        %492 = vmatprep.subr.mxu0 0.0
        %493 = vmatpush1.xpose.msra.mxu0 0.0
        %494 = vmatprep.subr.mxu0 0.0
        %495 = vmatpush1.xpose.msra.mxu0 0.0
        %496 = vmatprep.subr.mxu0 0.0
        %497 = vmatpush1.xpose.msra.mxu0 0.0
        %498 = vmatprep.subr.mxu0 0.0
        %499 = vmatpush1.xpose.msra.mxu0 0.0
        %500 = vmatprep.subr.mxu0 0.0
        %501 = vmatpush1.xpose.msra.mxu0 0.0
        %502 = vmatprep.subr.mxu0 0.0
        %503 = vmatpush1.xpose.msra.mxu0 0.0
        %504 = vmatprep.subr.mxu0 0.0
        %505 = vmatpush1.xpose.msra.mxu0 0.0
        %506 = vmatprep.subr.mxu0 0.0
        %507 = vmatpush1.xpose.msra.mxu0 0.0
        %508 = vmatprep.subr.mxu0 0.0
        %509 = vmatpush1.xpose.msra.mxu0 0.0
        %510 = vmatprep.subr.mxu0 0.0
        %511 = vmatpush1.xpose.msra.mxu0 0.0
        %512 = vmatprep.subr.mxu0 0.0
        %513 = vmatpush1.xpose.msra.mxu0 0.0
        %514 = vmatprep.subr.mxu0 0.0
        %515 = vmatpush1.xpose.msra.mxu0 0.0
        %516 = vmatprep.subr.mxu0 0.0
        %517 = vmatpush1.xpose.msra.mxu0 0.0
        %518 = vmatprep.subr.mxu0 0.0
        %519 = vmatpush1.xpose.msra.mxu0 0.0
        %520 = vmatprep.subr.mxu0 0.0
        %521 = vmatpush1.xpose.msra.mxu0 0.0
        %522 = vmatprep.subr.mxu0 0.0
        %523 = vmatpush1.xpose.msra.mxu0 0.0
        %524 = vmatprep.subr.mxu0 0.0
        %525 = vmatpush1.xpose.msra.mxu0 0.0
        %526 = vmatprep.subr.mxu0 0.0
        %527 = vmatpush1.xpose.msra.mxu0 0.0
        %528 = vmatprep.subr.mxu0 0.0
        %529 = vmatpush1.xpose.msra.mxu0 0.0
        %530 = vmatprep.subr.mxu0 0.0
        %531 = vmatpush1.xpose.msra.mxu0 0.0
        %532 = vmatprep.subr.mxu0 0.0
        %533 = vmatpush1.xpose.msra.mxu0 0.0
        %534 = vmatprep.subr.mxu0 0.0
        %535 = vmatpush1.xpose.msra.mxu0 0.0
        %536 = vmatprep.mubr.f32.mxu0 %v470
        %537 = vmatmul.mubr.f32.gmra.mrb[0].mxu0 %v302
        %v538 = vpop.f32.mrb[0].mxu0
        %v539 = vadd.f32 0.0, %v538
        %v540 = vpop.f32.mrb[0].mxu0
        %541 = vdwg.mxu0
        %v542 = vrcp.pop %v539
        %v543 = vmul.f32 1.0, %v542
        %v545 = vrot.slane %v543, 7
        %v547 = vmul.f32 %v539, %v545
        %vm548 = vcmask 254977
        %549 = vst.msk [vmem:[#allocation2 - $0x1] sm:$0x2] %vm548, %v547
        %v550 = vrot.slane %v543, 6
        %v552 = vmul.f32 %v539, %v550
        %vm553 = vcmask 256002
        %554 = vst.msk [vmem:[#allocation3 - $0x2] sm:$0x4] %vm553, %v552
        %v555 = vld [vmem:[#allocation2] sm:$0x1]
        %v556 = vld [vmem:[%s4] sm:$0xff]
        %v557 = vld [vmem:[%s4 + $0x8] sm:$0xff]
        %v558 = vld [vmem:[%s4 + $0x10] sm:$0xff]
        %v559 = vld [vmem:[%s4 + $0x18] sm:$0xff]
        %v560 = vld [vmem:[#allocation3] sm:$0x1]
        %v561 = vld [vmem:[%s5] sm:$0xff]
        %v562 = vld [vmem:[%s5 + $0x8] sm:$0xff]
        %v563 = vld [vmem:[%s5 + $0x10] sm:$0xff]
        %v564 = vld [vmem:[%s5 + $0x18] sm:$0xff]
        %vm565 = vcmask 261120
        %v567 = vsel %vm565, %v560, 0
        %569 = vmatprep.subr.mxu0 0.0
        %570 = vmatpush1.msra.mxu0 %v561
        %571 = vmatprep.subr.mxu0 0.0
        %572 = vmatpush1.msra.mxu0 %v562
        %573 = vmatprep.subr.mxu0 0.0
        %574 = vmatpush1.msra.mxu0 %v563
        %575 = vmatprep.subr.mxu0 0.0
        %576 = vmatpush1.msra.mxu0 %v564
        %577 = vmatprep.subr.mxu0 0.0
        %578 = vmatpush1.msra.mxu0 0.0
        %579 = vmatprep.subr.mxu0 0.0
        %580 = vmatpush1.msra.mxu0 0.0
        %581 = vmatprep.subr.mxu0 0.0
        %582 = vmatpush1.msra.mxu0 0.0
        %583 = vmatprep.subr.mxu0 0.0
        %584 = vmatpush1.msra.mxu0 0.0
        %585 = vmatprep.subr.mxu0 0.0
        %586 = vmatpush1.msra.mxu0 0.0
        %587 = vmatprep.subr.mxu0 0.0
        %588 = vmatpush1.msra.mxu0 0.0
        %589 = vmatprep.subr.mxu0 0.0
        %590 = vmatpush1.msra.mxu0 0.0
        %591 = vmatprep.subr.mxu0 0.0
        %592 = vmatpush1.msra.mxu0 0.0
        %593 = vmatprep.subr.mxu0 0.0
        %594 = vmatpush1.msra.mxu0 0.0
        %595 = vmatprep.subr.mxu0 0.0
        %596 = vmatpush1.msra.mxu0 0.0
        %597 = vmatprep.subr.mxu0 0.0
        %598 = vmatpush1.msra.mxu0 0.0
        %599 = vmatprep.subr.mxu0 0.0
        %600 = vmatpush1.msra.mxu0 0.0
        %601 = vmatprep.subr.mxu0 0.0
        %602 = vmatpush1.msra.mxu0 0.0
        %603 = vmatprep.subr.mxu0 0.0
        %604 = vmatpush1.msra.mxu0 0.0
        %605 = vmatprep.subr.mxu0 0.0
        %606 = vmatpush1.msra.mxu0 0.0
        %607 = vmatprep.subr.mxu0 0.0
        %608 = vmatpush1.msra.mxu0 0.0
        %609 = vmatprep.subr.mxu0 0.0
        %610 = vmatpush1.msra.mxu0 0.0
        %611 = vmatprep.subr.mxu0 0.0
        %612 = vmatpush1.msra.mxu0 0.0
        %613 = vmatprep.subr.mxu0 0.0
        %614 = vmatpush1.msra.mxu0 0.0
        %615 = vmatprep.subr.mxu0 0.0
        %616 = vmatpush1.msra.mxu0 0.0
        %617 = vmatprep.subr.mxu0 0.0
        %618 = vmatpush1.msra.mxu0 0.0
        %619 = vmatprep.subr.mxu0 0.0
        %620 = vmatpush1.msra.mxu0 0.0
        %621 = vmatprep.subr.mxu0 0.0
        %622 = vmatpush1.msra.mxu0 0.0
        %623 = vmatprep.subr.mxu0 0.0
        %624 = vmatpush1.msra.mxu0 0.0
        %625 = vmatprep.subr.mxu0 0.0
        %626 = vmatpush1.msra.mxu0 0.0
        %627 = vmatprep.subr.mxu0 0.0
        %628 = vmatpush1.msra.mxu0 0.0
        %629 = vmatprep.subr.mxu0 0.0
        %630 = vmatpush1.msra.mxu0 0.0
        %631 = vmatprep.subr.mxu0 0.0
        %632 = vmatpush1.msra.mxu0 0.0
        %633 = vmatprep.mubr.f32.mxu0 0.0
        %634 = vmatmul.mubr.f32.gmra.mrb[0].mxu0 %v567
        %v635 = vpop.f32.mrb[0].mxu0
        %v636 = vadd.f32 0.0, %v635
        %v637 = vpop.f32.mrb[0].mxu0
        %638 = vdwg.mxu0
        %v640 = vsel %vm565, %v555, 0
        %642 = vmatprep.subr.mxu0 0.0
        %643 = vmatpush1.msra.mxu0 %v556
        %644 = vmatprep.subr.mxu0 0.0
        %645 = vmatpush1.msra.mxu0 %v557
        %646 = vmatprep.subr.mxu0 0.0
        %647 = vmatpush1.msra.mxu0 %v558
        %648 = vmatprep.subr.mxu0 0.0
        %649 = vmatpush1.msra.mxu0 %v559
        %650 = vmatprep.subr.mxu0 0.0
        %651 = vmatpush1.msra.mxu0 0.0
        %652 = vmatprep.subr.mxu0 0.0
        %653 = vmatpush1.msra.mxu0 0.0
        %654 = vmatprep.subr.mxu0 0.0
        %655 = vmatpush1.msra.mxu0 0.0
        %656 = vmatprep.subr.mxu0 0.0
        %657 = vmatpush1.msra.mxu0 0.0
        %658 = vmatprep.subr.mxu0 0.0
        %659 = vmatpush1.msra.mxu0 0.0
        %660 = vmatprep.subr.mxu0 0.0
        %661 = vmatpush1.msra.mxu0 0.0
        %662 = vmatprep.subr.mxu0 0.0
        %663 = vmatpush1.msra.mxu0 0.0
        %664 = vmatprep.subr.mxu0 0.0
        %665 = vmatpush1.msra.mxu0 0.0
        %666 = vmatprep.subr.mxu0 0.0
        %667 = vmatpush1.msra.mxu0 0.0
        %668 = vmatprep.subr.mxu0 0.0
        %669 = vmatpush1.msra.mxu0 0.0
        %670 = vmatprep.subr.mxu0 0.0
        %671 = vmatpush1.msra.mxu0 0.0
        %672 = vmatprep.subr.mxu0 0.0
        %673 = vmatpush1.msra.mxu0 0.0
        %674 = vmatprep.subr.mxu0 0.0
        %675 = vmatpush1.msra.mxu0 0.0
        %676 = vmatprep.subr.mxu0 0.0
        %677 = vmatpush1.msra.mxu0 0.0
        %678 = vmatprep.subr.mxu0 0.0
        %679 = vmatpush1.msra.mxu0 0.0
        %680 = vmatprep.subr.mxu0 0.0
        %681 = vmatpush1.msra.mxu0 0.0
        %682 = vmatprep.subr.mxu0 0.0
        %683 = vmatpush1.msra.mxu0 0.0
        %684 = vmatprep.subr.mxu0 0.0
        %685 = vmatpush1.msra.mxu0 0.0
        %686 = vmatprep.subr.mxu0 0.0
        %687 = vmatpush1.msra.mxu0 0.0
        %688 = vmatprep.subr.mxu0 0.0
        %689 = vmatpush1.msra.mxu0 0.0
        %690 = vmatprep.subr.mxu0 0.0
        %691 = vmatpush1.msra.mxu0 0.0
        %692 = vmatprep.subr.mxu0 0.0
        %693 = vmatpush1.msra.mxu0 0.0
        %694 = vmatprep.subr.mxu0 0.0
        %695 = vmatpush1.msra.mxu0 0.0
        %696 = vmatprep.subr.mxu0 0.0
        %697 = vmatpush1.msra.mxu0 0.0
        %698 = vmatprep.subr.mxu0 0.0
        %699 = vmatpush1.msra.mxu0 0.0
        %700 = vmatprep.subr.mxu0 0.0
        %701 = vmatpush1.msra.mxu0 0.0
        %702 = vmatprep.subr.mxu0 0.0
        %703 = vmatpush1.msra.mxu0 0.0
        %704 = vmatprep.subr.mxu0 0.0
        %705 = vmatpush1.msra.mxu0 0.0
        %706 = vmatprep.mubr.f32.mxu0 0.0
        %707 = vmatmul.mubr.f32.gmra.mrb[0].mxu0 %v640
        %v708 = vpop.f32.mrb[0].mxu0
        %v709 = vadd.f32 %v636, %v708
        %v710 = vpop.f32.mrb[0].mxu0
        %711 = vdwg.mxu0
        %v712 = vld [vmem:[%s6] sm:$0x1]
        %v713 = vadd.f32 %v709, %v712
        %vm714 = vcmask 516096
        %715 = vst.msk [vmem:[%s293] sm:$0x1] %vm714, %v713
        %s716 = sand.u32 %s184, 1
        %s717 = scalar_lea.sflag [#allocation6], %s716
        %s718 = sand.u32 %s184, 1
        %s719 = scalar_lea.vmem [#allocation7], %s718
        // Predicated region
        $region53: #{tpu_custom_call.1} parent=47 // pred_check
          %p720 = pneg %p194
        $region54: #{tpu_custom_call.1} parent=47 // pred_check_branch
          %722 = sbr.rel (%p720) target = $region56
        $region55: #{tpu_custom_call.1} parent=47 // pred_region
          %s724 = ssub.s32 16, 16
          %725 = vsyncadd %s717, %s724
          %s726 = smul.addr %s24, 16
          %s727 = scalar_lea.hbm %s7, %s726
          %s729 = sshll.u32 %s719, 4
          %s730 = int_to_ptr.vmem [resolvable:$true] %s729
          %732 = dma.vmem_to_hbm [thread:$0]  %s730, 16, %s727, %s717
        $region56: #{tpu_custom_call.1} parent=47 // pred_fallthru
          _
      $region48: #{tpu_custom_call.1} parent=5 // pred_fallthru
        _
      %p733 = scmp.le.s32.totalorder 2, %s19
      // Predicated region
      $region57: #{tpu_custom_call.1} parent=5 // pred_check
        %p734 = pneg %p733
      $region58: #{tpu_custom_call.1} parent=5 // pred_check_branch
        %736 = sbr.rel (%p734) target = $region60
      $region59: #{tpu_custom_call.1} parent=5 // pred_region
        %s737 = ssub.s32 %s19, 2
        // Predicated region
        $region61: #{tpu_custom_call.1} parent=59 // pred_check
          %p738 = pneg %p200
        $region62: #{tpu_custom_call.1} parent=59 // pred_check_branch
          %740 = sbr.rel (%p738) target = $region64
        $region63: #{tpu_custom_call.1} parent=59 // pred_region
          %s741 = sand.u32 %s185, 1
          %s742 = scalar_lea.sflag [#allocation6], %s741
          %s743 = sand.u32 %s185, 1
          %s744 = scalar_lea.vmem [#allocation7], %s743
          %745 = dma.done %s742, 16
        $region64: #{tpu_custom_call.1} parent=59 // pred_fallthru
          _
      $region60: #{tpu_custom_call.1} parent=5 // pred_fallthru
        _
    $region6: #{tpu_custom_call.1} parent=1 // loop_footer
      %s23 = sadd.s32 1, %s19
    $region7: #{tpu_custom_call.1} parent=1 // loop_footer_branch
      %18 = sbr.rel target = $region3
    $region8: #{tpu_custom_call.1} parent=1 // loop_exit
      _
    %746 = vsyncpa [#allocation5], 1
    %s747 = scalar_lea.sflag [#allocation5], 1
    %748 = vsyncpa %s747, 1
    %749 = vsyncpa [#allocation6], 1
    %s750 = scalar_lea.sflag [#allocation6], 1
    %751 = vsyncpa %s750, 1

</llo_original>
